<compile_context>
chip_gen: v7x
topology: tpu7x:2x2x1
jax: 0.10.0
libtpu: 0.0.40
codegen_flags: <defaults>
</compile_context>

<pallas_src>
import functools

import jax
import jax.numpy as jnp
from jax.experimental import pallas as pl
from jax.experimental.pallas import tpu as pltpu

LANE = 128        # TPU vreg lane width
TM_TARGET = 512   # rows per grid step; fits VMEM budgets on v5e/v6e/v7x at d_model=768


def _fused_mlp_kernel(*refs, num_layers: int):
    """refs = (x, w0, b0, w1, b1, ..., w_{L-1}, b_{L-1}, o).

    x / o are (TM, .) row tiles of the current grid step; all weights/biases
    are full-extent VMEM blocks that stay resident across grid steps.  The
    layer loop is a static Python `for`, so the whole MLP lowers into one
    kernel body; inter-layer activations live as on-chip VMEM temporaries
    (never HBM), and only the final lane-padded activation is stored.
    """
    x_ref = refs[0]
    o_ref = refs[-1]
    layer_refs = refs[1:-1]

    x = x_ref[...]                         # (TM, Din) bf16
    for i in range(num_layers):
        w = layer_refs[2 * i][...]         # (Din_i, Dout_i) bf16
        b = layer_refs[2 * i + 1][...]     # (1, Dout_i) f32, broadcast over rows
        # bf16 MXU matmul, f32 accumulation; bias-add / ReLU in f32.
        y = jnp.dot(x, w, preferred_element_type=jnp.float32) + b
        if i < num_layers - 1:
            y = jnp.maximum(y, 0.0)        # ReLU on all but the last layer
            x = y.astype(jnp.bfloat16)     # next matmul input in bf16
        else:
            x = y                          # final layer output stays f32
    o_ref[...] = x.astype(o_ref.dtype)


def _row_tile_map(i):
    return (i, 0)


def _resident_map(i):
    # Weights / biases: same block for every grid step -> DMA'd once, resident.
    return (0, 0)


@functools.partial(jax.jit, static_argnames=("num_layers", "out_dim"))
def mlp_pallas_forward(x, padded_params, *, num_layers, out_dim):
    """x: (..., Din) -> (..., out_dim), f32 output.  One fused pallas_call."""
    lead_shape = x.shape[:-1]
    din = x.shape[-1]
    m = 1
    for s in lead_shape:
        m *= s
    x2d = x.reshape(m, din).astype(jnp.bfloat16)

    # Row tile: full extent for small M (test shapes), TM_TARGET (multiple of 8)
    # otherwise; partial last blocks are masked by Pallas.
    tm = m if m <= TM_TARGET else TM_TARGET
    grid = (pl.cdiv(m, tm),)

    flat_inputs = [x2d]
    in_specs = [pl.BlockSpec((tm, din), _row_tile_map)]
    flops = 0
    bytes_accessed = x2d.size * x2d.dtype.itemsize
    for w, b in padded_params:
        flat_inputs += [w, b]
        in_specs += [
            pl.BlockSpec(w.shape, _resident_map),
            pl.BlockSpec(b.shape, _resident_map),
        ]
        flops += 2 * m * w.shape[0] * w.shape[1]
        bytes_accessed += w.size * w.dtype.itemsize + b.size * b.dtype.itemsize

    out_pad = padded_params[-1][0].shape[1]  # lane-padded final width (==128)
    out_dtype = jnp.float32
    bytes_accessed += m * out_pad * jnp.dtype(out_dtype).itemsize

    out2d = pl.pallas_call(
        functools.partial(_fused_mlp_kernel, num_layers=num_layers),
        grid=grid,
        out_shape=jax.ShapeDtypeStruct((m, out_pad), out_dtype),
        in_specs=in_specs,
        out_specs=pl.BlockSpec((tm, out_pad), _row_tile_map),
        compiler_params=pltpu.CompilerParams(
            dimension_semantics=("parallel",),      # M tiles are independent (v7x: 2 TCs)
            vmem_limit_bytes=32 * 1024 * 1024,      # >= default on v5e, <= physical on v7x
        ),
        cost_estimate=pl.CostEstimate(
            flops=flops, transcendentals=0, bytes_accessed=bytes_accessed
        ),
    )(*flat_inputs)

    return out2d[:, :out_dim].reshape(*lead_shape, out_dim)


class MLPPallas:
    """Mirrors the PyTorch MLP head of DecoderEntireLandmark:
    num_layers Linear layers with ReLU between them, applied over the last dim."""

    def __init__(self, input_dim, hidden_dim, output_dim, num_layers, key):
        self.num_layers = num_layers
        self.output_dim = output_dim
        h = [hidden_dim] * (num_layers - 1)
        dims_in = [input_dim] + h
        dims_out = h + [output_dim]

        self.params = []      # unpadded f32 (w, b) — used by the reference
        padded = []
        for li, (n, k) in enumerate(zip(dims_in, dims_out)):
            key, wk, bk = jax.random.split(key, 3)
            # Deterministic init (roughly PyTorch nn.Linear scale); real use
            # would load checkpoint weights instead.
            bound = 1.0 / jnp.sqrt(jnp.float32(n))
            w = jax.random.uniform(wk, (n, k), jnp.float32, -bound, bound)  # (in, out)
            b = jax.random.uniform(bk, (k,), jnp.float32, -bound, bound)
            self.params.append((w, b))

            w_k = w.astype(jnp.bfloat16)   # bf16 weights for the MXU
            b2d = b.reshape(1, k)          # f32 bias, pre-stored as 2-D
            if li == num_layers - 1:
                # Lane-dense final store: pad last layer to exactly one
                # 128-lane multiple so the kernel writes an unmasked slab.
                k_pad = max(LANE, ((k + LANE - 1) // LANE) * LANE)
                w_k = jnp.pad(w_k, ((0, 0), (0, k_pad - k)))
                b2d = jnp.pad(b2d, ((0, 0), (0, k_pad - k)))
            padded.append((w_k, b2d))
        self.padded_params = tuple(padded)

    def __call__(self, x):
        return mlp_pallas_forward(
            x,
            self.padded_params,
            num_layers=self.num_layers,
            out_dim=self.output_dim,
        )


def mlp_reference_mixed(params, num_layers, x):
    """Pure-JAX reference mimicking the kernel's precision policy:
    bf16 matmul inputs, f32 accumulation / bias / ReLU."""
    x = x.astype(jnp.bfloat16)
    for i, (w, b) in enumerate(params):
        y = jnp.dot(x, w.astype(jnp.bfloat16), preferred_element_type=jnp.float32) + b
        if i < num_layers - 1:
            x = jnp.maximum(y, 0.0).astype(jnp.bfloat16)
        else:
            x = y
    return x


if __name__ == "__main__":
    key = jax.random.PRNGKey(0)
    key, xk, pk = jax.random.split(key, 3)

    # Small stand-ins for the real head (bs, n_landmarks=512, d_model=768).
    bs, n_landmarks, d_model = 2, 8, 32
    ldmks_dim, uncertainty = 2, True
    output_dim = ldmks_dim + 1 if uncertainty else ldmks_dim  # = 3
    num_layers = 3                                            # MLP(d, d, out, 3)

    # hs: decoder output per landmark query, shape (bs, n_landmarks, d_model).
    hs = jax.random.normal(xk, (bs, n_landmarks, d_model), jnp.float32)

    mlp = MLPPallas(d_model, d_model, output_dim, num_layers, pk)

    joints2d = mlp(hs)
    joints2d = jax.block_until_ready(joints2d)

    ref = mlp_reference_mixed(mlp.params, num_layers, hs)
    assert joints2d.shape == (bs, n_landmarks, output_dim)
    assert joints2d.dtype == jnp.float32
    assert jnp.allclose(joints2d, ref, atol=1e-2, rtol=1e-2)

    print("KERNEL_OK")
</pallas_src>

<mosaic_0001>
module attributes {stable_mosaic.version = 11 : i64} {
  func.func @_fused_mlp_kernel(%arg0: i32, %arg1: memref<16x32xbf16, #tpu.memory_space<vmem>>, %arg2: memref<32x32xbf16, #tpu.memory_space<vmem>>, %arg3: memref<1x32xf32, #tpu.memory_space<vmem>>, %arg4: memref<32x32xbf16, #tpu.memory_space<vmem>>, %arg5: memref<1x32xf32, #tpu.memory_space<vmem>>, %arg6: memref<32x128xbf16, #tpu.memory_space<vmem>>, %arg7: memref<1x128xf32, #tpu.memory_space<vmem>>, %arg8: memref<16x128xf32, #tpu.memory_space<vmem>>) attributes {dimension_semantics = [#tpu.dimension_semantics<parallel>], iteration_bounds = array<i64: 1>, scalar_prefetch = 0 : i64, scratch_operands = 0 : i64, tpu.core_type = #tpu.core_type<tc>, window_params = [{transform_indices = @transform_0, window_bounds = array<i64: 16, 32>}, {pipeline_mode = #tpu.pipeline_mode<synchronous>, transform_indices = @transform_1, window_bounds = array<i64: 32, 32>}, {pipeline_mode = #tpu.pipeline_mode<synchronous>, transform_indices = @transform_2, window_bounds = array<i64: 1, 32>}, {pipeline_mode = #tpu.pipeline_mode<synchronous>, transform_indices = @transform_3, window_bounds = array<i64: 32, 32>}, {pipeline_mode = #tpu.pipeline_mode<synchronous>, transform_indices = @transform_4, window_bounds = array<i64: 1, 32>}, {pipeline_mode = #tpu.pipeline_mode<synchronous>, transform_indices = @transform_5, window_bounds = array<i64: 32, 128>}, {pipeline_mode = #tpu.pipeline_mode<synchronous>, transform_indices = @transform_6, window_bounds = array<i64: 1, 128>}, {transform_indices = @transform_7, window_bounds = array<i64: 16, 128>}]} {
    %c0 = arith.constant 0 : index
    %c0_0 = arith.constant 0 : index
    %0 = vector.load %arg1[%c0, %c0_0] : memref<16x32xbf16, #tpu.memory_space<vmem>>, vector<16x32xbf16>
    %c0_1 = arith.constant 0 : index
    %c0_2 = arith.constant 0 : index
    %1 = vector.load %arg2[%c0_1, %c0_2] : memref<32x32xbf16, #tpu.memory_space<vmem>>, vector<32x32xbf16>
    %c0_3 = arith.constant 0 : index
    %c0_4 = arith.constant 0 : index
    %2 = vector.load %arg3[%c0_3, %c0_4] : memref<1x32xf32, #tpu.memory_space<vmem>>, vector<1x32xf32>
    %cst = arith.constant dense<0.000000e+00> : vector<16x32xf32>
    %3 = tpu.matmul %0, %1, %cst {dimension_numbers = #tpu.dot_dimension_numbers<[1], [0], [0], [1], [0, 0, 1, 1], [], []>} : vector<16x32xbf16>, vector<32x32xbf16>, vector<16x32xf32> -> vector<16x32xf32>
    %4 = vector.broadcast %2 : vector<1x32xf32> to vector<16x32xf32>
    %5 = arith.addf %3, %4 : vector<16x32xf32>
    %cst_5 = arith.constant 0.000000e+00 : f32
    %6 = vector.broadcast %cst_5 : f32 to vector<16x32xf32>
    %7 = arith.maximumf %5, %6 : vector<16x32xf32>
    %8 = arith.truncf %7 : vector<16x32xf32> to vector<16x32xbf16>
    %c0_6 = arith.constant 0 : index
    %c0_7 = arith.constant 0 : index
    %9 = vector.load %arg4[%c0_6, %c0_7] : memref<32x32xbf16, #tpu.memory_space<vmem>>, vector<32x32xbf16>
    %c0_8 = arith.constant 0 : index
    %c0_9 = arith.constant 0 : index
    %10 = vector.load %arg5[%c0_8, %c0_9] : memref<1x32xf32, #tpu.memory_space<vmem>>, vector<1x32xf32>
    %cst_10 = arith.constant dense<0.000000e+00> : vector<16x32xf32>
    %11 = tpu.matmul %8, %9, %cst_10 {dimension_numbers = #tpu.dot_dimension_numbers<[1], [0], [0], [1], [0, 0, 1, 1], [], []>} : vector<16x32xbf16>, vector<32x32xbf16>, vector<16x32xf32> -> vector<16x32xf32>
    %12 = vector.broadcast %10 : vector<1x32xf32> to vector<16x32xf32>
    %13 = arith.addf %11, %12 : vector<16x32xf32>
    %cst_11 = arith.constant 0.000000e+00 : f32
    %14 = vector.broadcast %cst_11 : f32 to vector<16x32xf32>
    %15 = arith.maximumf %13, %14 : vector<16x32xf32>
    %16 = arith.truncf %15 : vector<16x32xf32> to vector<16x32xbf16>
    %c0_12 = arith.constant 0 : index
    %c0_13 = arith.constant 0 : index
    %17 = vector.load %arg6[%c0_12, %c0_13] : memref<32x128xbf16, #tpu.memory_space<vmem>>, vector<32x128xbf16>
    %c0_14 = arith.constant 0 : index
    %c0_15 = arith.constant 0 : index
    %18 = vector.load %arg7[%c0_14, %c0_15] : memref<1x128xf32, #tpu.memory_space<vmem>>, vector<1x128xf32>
    %cst_16 = arith.constant dense<0.000000e+00> : vector<16x128xf32>
    %19 = tpu.matmul %16, %17, %cst_16 {dimension_numbers = #tpu.dot_dimension_numbers<[1], [0], [0], [1], [0, 0, 1, 1], [], []>} : vector<16x32xbf16>, vector<32x128xbf16>, vector<16x128xf32> -> vector<16x128xf32>
    %20 = vector.broadcast %18 : vector<1x128xf32> to vector<16x128xf32>
    %21 = arith.addf %19, %20 : vector<16x128xf32>
    %c0_17 = arith.constant 0 : index
    %c0_18 = arith.constant 0 : index
    %22 = vector.load %arg8[%c0_17, %c0_18] : memref<16x128xf32, #tpu.memory_space<vmem>>, vector<16x128xf32>
    tpu.vector_store %arg8[%c0_17, %c0_18], %21 {strides = array<i32>} : memref<16x128xf32, #tpu.memory_space<vmem>>, vector<16x128xf32>,
    return
  }
  func.func @transform_0(%arg0: i32) -> (i32, i32) {
    %c0_i32 = arith.constant 0 : i32
    %c0_i32_0 = arith.constant 0 : i32
    return %arg0, %c0_i32 : i32, i32
  }
  func.func @transform_1(%arg0: i32) -> (i32, i32) {
    %c0_i32 = arith.constant 0 : i32
    %c0_i32_0 = arith.constant 0 : i32
    %c0_i32_1 = arith.constant 0 : i32
    return %c0_i32, %c0_i32_0 : i32, i32
  }
  func.func @transform_2(%arg0: i32) -> (i32, i32) {
    %c0_i32 = arith.constant 0 : i32
    %c0_i32_0 = arith.constant 0 : i32
    %c0_i32_1 = arith.constant 0 : i32
    return %c0_i32, %c0_i32_0 : i32, i32
  }
  func.func @transform_3(%arg0: i32) -> (i32, i32) {
    %c0_i32 = arith.constant 0 : i32
    %c0_i32_0 = arith.constant 0 : i32
    %c0_i32_1 = arith.constant 0 : i32
    return %c0_i32, %c0_i32_0 : i32, i32
  }
  func.func @transform_4(%arg0: i32) -> (i32, i32) {
    %c0_i32 = arith.constant 0 : i32
    %c0_i32_0 = arith.constant 0 : i32
    %c0_i32_1 = arith.constant 0 : i32
    return %c0_i32, %c0_i32_0 : i32, i32
  }
  func.func @transform_5(%arg0: i32) -> (i32, i32) {
    %c0_i32 = arith.constant 0 : i32
    %c0_i32_0 = arith.constant 0 : i32
    %c0_i32_1 = arith.constant 0 : i32
    return %c0_i32, %c0_i32_0 : i32, i32
  }
  func.func @transform_6(%arg0: i32) -> (i32, i32) {
    %c0_i32 = arith.constant 0 : i32
    %c0_i32_0 = arith.constant 0 : i32
    %c0_i32_1 = arith.constant 0 : i32
    return %c0_i32, %c0_i32_0 : i32, i32
  }
  func.func @transform_7(%arg0: i32) -> (i32, i32) {
    %c0_i32 = arith.constant 0 : i32
    %c0_i32_0 = arith.constant 0 : i32
    return %arg0, %c0_i32 : i32, i32
  }
}

</mosaic_0001>

<llo_original>
// kernel: mlp_pallas_forward.1
$region0: #{mlp_pallas_forward.1}
  #allocation0 [shape = 'u32[]', space=smem, size = 0x4, offset = 0x4, fixed_abs, tag = 'smem constant byte address 0x4 - core index']
  #allocation1 [shape = 'u32[144,128]{1,0:T(1,128)}', space=vmem, size = 0x12000, scoped, tag = 'internal scratch']
  %s0 = inlined_call_operand.vmem [shape: bf16[16,32], index: 0, kind: input, shape index: {}]
  %s1 = inlined_call_operand.vmem [shape: bf16[32,32], index: 1, kind: input, shape index: {}]
  %s2 = inlined_call_operand.vmem [shape: f32[1,32], index: 2, kind: input, shape index: {}]
  %s3 = inlined_call_operand.vmem [shape: bf16[32,32], index: 3, kind: input, shape index: {}]
  %s4 = inlined_call_operand.vmem [shape: f32[1,32], index: 4, kind: input, shape index: {}]
  %s5 = inlined_call_operand.hbm [shape: bf16[32,128], index: 5, kind: input, shape index: {}]
  %s6 = inlined_call_operand.vmem [shape: f32[1,128], index: 6, kind: input, shape index: {}]
  %s7 = inlined_call_operand.vmem [shape: f32[16,128], index: 7, kind: output, shape index: {}]
  %s8 = sld [smem:[#allocation0]]
  $region42: #{mlp_pallas_forward.1} parent=0
    _
  %s10 = ssub.s32 1, %s8
  %s11 = scalar_select 0, %s10, %s8
  $region1: #{mlp_pallas_forward.1} parent=0
    #allocation2 [shape = 'u8[8192]{0}', space=vmem, size = 0x2000, scoped, tag = 'input window, operand 5, single buffered']
    #allocation3 [shape = 's32[1]{0}', space=sflag, size = 0x4, scoped, tag = 'scoped memory for mlp_pallas_forward.1']
    %12 = vsyncpa [#allocation3], 0
    // Predicated region
    $region2: #{mlp_pallas_forward.1} parent=1 // pred_check
      _
    $region3: #{mlp_pallas_forward.1} parent=1 // pred_check_branch
      %14 = sbr.rel (0) target = $region5
    $region4: #{mlp_pallas_forward.1} parent=1 // pred_region
      _
    $region5: #{mlp_pallas_forward.1} parent=1 // pred_fallthru
      _
    // Predicated region
    $region6: #{mlp_pallas_forward.1} parent=1 // pred_check
      _
    $region7: #{mlp_pallas_forward.1} parent=1 // pred_check_branch
      %16 = sbr.rel (0) target = $region9
    $region8: #{mlp_pallas_forward.1} parent=1 // pred_region
      _
    $region9: #{mlp_pallas_forward.1} parent=1 // pred_fallthru
      _
    // Predicated region
    $region10: #{mlp_pallas_forward.1} parent=1 // pred_check
      _
    $region11: #{mlp_pallas_forward.1} parent=1 // pred_check_branch
      %18 = sbr.rel (0) target = $region13
    $region12: #{mlp_pallas_forward.1} parent=1 // pred_region
      _
    $region13: #{mlp_pallas_forward.1} parent=1 // pred_fallthru
      _
    // Predicated region
    $region14: #{mlp_pallas_forward.1} parent=1 // pred_check
      _
    $region15: #{mlp_pallas_forward.1} parent=1 // pred_check_branch
      %20 = sbr.rel (0) target = $region17
    $region16: #{mlp_pallas_forward.1} parent=1 // pred_region
      _
    $region17: #{mlp_pallas_forward.1} parent=1 // pred_fallthru
      _
    // Predicated region
    $region18: #{mlp_pallas_forward.1} parent=1 // pred_check
      _
    $region19: #{mlp_pallas_forward.1} parent=1 // pred_check_branch
      %22 = sbr.rel (0) target = $region21
    $region20: #{mlp_pallas_forward.1} parent=1 // pred_region
      _
    $region21: #{mlp_pallas_forward.1} parent=1 // pred_fallthru
      _
    // Predicated region
    $region22: #{mlp_pallas_forward.1} parent=1 // pred_check
      _
    $region23: #{mlp_pallas_forward.1} parent=1 // pred_check_branch
      %24 = sbr.rel (0) target = $region25
    $region24: #{mlp_pallas_forward.1} parent=1 // pred_region
      %s26 = ssub.s32 256, 256
      %27 = vsyncadd [#allocation3], %s26
      %s28 = sshll.u32 [#allocation2], 4
      %s29 = int_to_ptr.vmem [resolvable:$true] %s28
      %34 = dma.hbm_to_vmem [thread:$0]  %s5, 256, %s29, [#allocation3], 64, 64, 4
    $region25: #{mlp_pallas_forward.1} parent=1 // pred_fallthru
      _
    // Predicated region
    $region26: #{mlp_pallas_forward.1} parent=1 // pred_check
      _
    $region27: #{mlp_pallas_forward.1} parent=1 // pred_check_branch
      %36 = sbr.rel (0) target = $region29
    $region28: #{mlp_pallas_forward.1} parent=1 // pred_region
      _
    $region29: #{mlp_pallas_forward.1} parent=1 // pred_fallthru
      _
    // Predicated region
    $region30: #{mlp_pallas_forward.1} parent=1 // pred_check
      _
    $region31: #{mlp_pallas_forward.1} parent=1 // pred_check_branch
      %38 = sbr.rel (0) target = $region33
    $region32: #{mlp_pallas_forward.1} parent=1 // pred_region
      %39 = dma.done [#allocation3], 256
    $region33: #{mlp_pallas_forward.1} parent=1 // pred_fallthru
      _
    %v41 = vld [vmem:[%s0] sm:$0xf]
    %v42 = vld [vmem:[%s0 + $0x4] sm:$0xf]
    %v43 = vld [vmem:[%s1] sm:$0xf]
    %v44 = vld [vmem:[%s1 + $0x4] sm:$0xf]
    %v45 = vld [vmem:[%s1 + $0x8] sm:$0xf]
    %v46 = vld [vmem:[%s1 + $0xc] sm:$0xf]
    %v47 = vld [vmem:[%s2] sm:$0x1]
    %v49 = vlaneseq
    %v50 = vshrl.u32 %v49, 7
    %v51 = vsub.s32 0, %v50
    %v52 = vrot.slane %v47, %v51
    %v56 = vunpack.c.l.b16 %v41
    %v57 = vunpack.c.l.b16 %v42
    %v58 = vpack.c.b16 %v57, %v56
    %v63 = vunpack.c.l.b16 %v43
    %v64 = vunpack.c.l.b16 %v44
    %v65 = vunpack.c.l.b16 %v45
    %v66 = vunpack.c.l.b16 %v46
    %v67 = vpack.c.b16 %v64, %v63
    %v68 = vpack.c.b16 %v66, %v65
    %vm71 = vcmask 261120
    %v73 = vsel %vm71, %v58, 0
    %75 = vmatprep.subr.bf16.mxu0 0
    %76 = vmatpush1.bf16.msra.mxu0 %v67
    %77 = vmatprep.subr.bf16.mxu0 0
    %78 = vmatpush1.bf16.msra.mxu0 %v68
    %79 = vmatprep.subr.bf16.mxu0 0
    %80 = vmatpush1.bf16.msra.mxu0 0
    %81 = vmatprep.subr.bf16.mxu0 0
    %82 = vmatpush1.bf16.msra.mxu0 0
    %83 = vmatprep.subr.bf16.mxu0 0
    %84 = vmatpush1.bf16.msra.mxu0 0
    %85 = vmatprep.subr.bf16.mxu0 0
    %86 = vmatpush1.bf16.msra.mxu0 0
    %87 = vmatprep.subr.bf16.mxu0 0
    %88 = vmatpush1.bf16.msra.mxu0 0
    %89 = vmatprep.subr.bf16.mxu0 0
    %90 = vmatpush1.bf16.msra.mxu0 0
    %91 = vmatprep.subr.bf16.mxu0 0
    %92 = vmatpush1.bf16.msra.mxu0 0
    %93 = vmatprep.subr.bf16.mxu0 0
    %94 = vmatpush1.bf16.msra.mxu0 0
    %95 = vmatprep.subr.bf16.mxu0 0
    %96 = vmatpush1.bf16.msra.mxu0 0
    %97 = vmatprep.subr.bf16.mxu0 0
    %98 = vmatpush1.bf16.msra.mxu0 0
    %99 = vmatprep.subr.bf16.mxu0 0
    %100 = vmatpush1.bf16.msra.mxu0 0
    %101 = vmatprep.subr.bf16.mxu0 0
    %102 = vmatpush1.bf16.msra.mxu0 0
    %103 = vmatprep.subr.bf16.mxu0 0
    %104 = vmatpush1.bf16.msra.mxu0 0
    %105 = vmatprep.subr.bf16.mxu0 0
    %106 = vmatpush1.bf16.msra.mxu0 0
    %107 = vmatprep.mubr.bf16.mxu0 0
    %108 = vmatmul.mubr.bf16.gmra.mrb[0].mxu0 %v73
    %v109 = vpop.f32.mrb[0].mxu0
    %v110 = vadd.f32 %v52, %v109
    %v111 = vpop.f32.mrb[0].mxu0
    %v112 = vpop.f32.mrb[0].mxu0
    %v113 = vadd.f32 %v52, %v112
    %v114 = vpop.f32.mrb[0].mxu0
    %115 = vdwg.mxu0
    %v116 = vmax.f32 %v110, 0.0
    %v117 = vmax.f32 %v113, 0.0
    %v118 = vpack.c.bf16 %v117, %v116
    %v119 = vld [vmem:[%s3] sm:$0xf]
    %v120 = vld [vmem:[%s3 + $0x4] sm:$0xf]
    %v121 = vld [vmem:[%s3 + $0x8] sm:$0xf]
    %v122 = vld [vmem:[%s3 + $0xc] sm:$0xf]
    %v123 = vld [vmem:[%s4] sm:$0x1]
    %v125 = vlaneseq
    %v126 = vshrl.u32 %v125, 7
    %v127 = vsub.s32 0, %v126
    %v128 = vrot.slane %v123, %v127
    %v134 = vunpack.c.l.b16 %v119
    %v135 = vunpack.c.l.b16 %v120
    %v136 = vunpack.c.l.b16 %v121
    %v137 = vunpack.c.l.b16 %v122
    %v138 = vpack.c.b16 %v135, %v134
    %v139 = vpack.c.b16 %v137, %v136
    %v143 = vsel %vm71, %v118, 0
    %145 = vmatprep.subr.bf16.mxu0 0
    %146 = vmatpush1.bf16.msra.mxu0 %v138
    %147 = vmatprep.subr.bf16.mxu0 0
    %148 = vmatpush1.bf16.msra.mxu0 %v139
    %149 = vmatprep.subr.bf16.mxu0 0
    %150 = vmatpush1.bf16.msra.mxu0 0
    %151 = vmatprep.subr.bf16.mxu0 0
    %152 = vmatpush1.bf16.msra.mxu0 0
    %153 = vmatprep.subr.bf16.mxu0 0
    %154 = vmatpush1.bf16.msra.mxu0 0
    %155 = vmatprep.subr.bf16.mxu0 0
    %156 = vmatpush1.bf16.msra.mxu0 0
    %157 = vmatprep.subr.bf16.mxu0 0
    %158 = vmatpush1.bf16.msra.mxu0 0
    %159 = vmatprep.subr.bf16.mxu0 0
    %160 = vmatpush1.bf16.msra.mxu0 0
    %161 = vmatprep.subr.bf16.mxu0 0
    %162 = vmatpush1.bf16.msra.mxu0 0
    %163 = vmatprep.subr.bf16.mxu0 0
    %164 = vmatpush1.bf16.msra.mxu0 0
    %165 = vmatprep.subr.bf16.mxu0 0
    %166 = vmatpush1.bf16.msra.mxu0 0
    %167 = vmatprep.subr.bf16.mxu0 0
    %168 = vmatpush1.bf16.msra.mxu0 0
    %169 = vmatprep.subr.bf16.mxu0 0
    %170 = vmatpush1.bf16.msra.mxu0 0
    %171 = vmatprep.subr.bf16.mxu0 0
    %172 = vmatpush1.bf16.msra.mxu0 0
    %173 = vmatprep.subr.bf16.mxu0 0
    %174 = vmatpush1.bf16.msra.mxu0 0
    %175 = vmatprep.subr.bf16.mxu0 0
    %176 = vmatpush1.bf16.msra.mxu0 0
    %177 = vmatprep.mubr.bf16.mxu0 0
    %178 = vmatmul.mubr.bf16.gmra.mrb[0].mxu0 %v143
    %v179 = vpop.f32.mrb[0].mxu0
    %v180 = vadd.f32 %v128, %v179
    %v181 = vpop.f32.mrb[0].mxu0
    %v182 = vpop.f32.mrb[0].mxu0
    %v183 = vadd.f32 %v128, %v182
    %v184 = vpop.f32.mrb[0].mxu0
    %185 = vdwg.mxu0
    %v186 = vmax.f32 %v180, 0.0
    %v187 = vmax.f32 %v183, 0.0
    %v188 = vpack.c.bf16 %v187, %v186
    %v189 = vld [vmem:[#allocation2] sm:$0xf]
    %v190 = vld [vmem:[#allocation2 + $0x4] sm:$0xf]
    %v191 = vld [vmem:[#allocation2 + $0x8] sm:$0xf]
    %v192 = vld [vmem:[#allocation2 + $0xc] sm:$0xf]
    %v193 = vld [vmem:[%s6] sm:$0x1]
    %v195 = vlaneseq
    %v196 = vshrl.u32 %v195, 7
    %v197 = vsub.s32 0, %v196
    %v198 = vrot.slane %v193, %v197
    %v204 = vunpack.c.l.b16 %v189
    %v205 = vunpack.c.l.b16 %v190
    %v206 = vunpack.c.l.b16 %v191
    %v207 = vunpack.c.l.b16 %v192
    %v208 = vpack.c.b16 %v205, %v204
    %v209 = vpack.c.b16 %v207, %v206
    %v213 = vsel %vm71, %v188, 0
    %215 = vmatprep.subr.bf16.mxu0 0
    %216 = vmatpush1.bf16.msra.mxu0 %v208
    %217 = vmatprep.subr.bf16.mxu0 0
    %218 = vmatpush1.bf16.msra.mxu0 %v209
    %219 = vmatprep.subr.bf16.mxu0 0
    %220 = vmatpush1.bf16.msra.mxu0 0
    %221 = vmatprep.subr.bf16.mxu0 0
    %222 = vmatpush1.bf16.msra.mxu0 0
    %223 = vmatprep.subr.bf16.mxu0 0
    %224 = vmatpush1.bf16.msra.mxu0 0
    %225 = vmatprep.subr.bf16.mxu0 0
    %226 = vmatpush1.bf16.msra.mxu0 0
    %227 = vmatprep.subr.bf16.mxu0 0
    %228 = vmatpush1.bf16.msra.mxu0 0
    %229 = vmatprep.subr.bf16.mxu0 0
    %230 = vmatpush1.bf16.msra.mxu0 0
    %231 = vmatprep.subr.bf16.mxu0 0
    %232 = vmatpush1.bf16.msra.mxu0 0
    %233 = vmatprep.subr.bf16.mxu0 0
    %234 = vmatpush1.bf16.msra.mxu0 0
    %235 = vmatprep.subr.bf16.mxu0 0
    %236 = vmatpush1.bf16.msra.mxu0 0
    %237 = vmatprep.subr.bf16.mxu0 0
    %238 = vmatpush1.bf16.msra.mxu0 0
    %239 = vmatprep.subr.bf16.mxu0 0
    %240 = vmatpush1.bf16.msra.mxu0 0
    %241 = vmatprep.subr.bf16.mxu0 0
    %242 = vmatpush1.bf16.msra.mxu0 0
    %243 = vmatprep.subr.bf16.mxu0 0
    %244 = vmatpush1.bf16.msra.mxu0 0
    %245 = vmatprep.subr.bf16.mxu0 0
    %246 = vmatpush1.bf16.msra.mxu0 0
    %247 = vmatprep.mubr.bf16.mxu0 0
    %248 = vmatmul.mubr.bf16.gmra.mrb[0].mxu0 %v213
    %v249 = vpop.f32.mrb[0].mxu0
    %v250 = vadd.f32 %v198, %v249
    %v251 = vpop.f32.mrb[0].mxu0
    %v252 = vpop.f32.mrb[0].mxu0
    %v253 = vadd.f32 %v198, %v252
    %v254 = vpop.f32.mrb[0].mxu0
    %255 = vdwg.mxu0
    %256 = vst [vmem:[%s7] sm:$0xff] %v250
    %257 = vst [vmem:[%s7 + $0x8] sm:$0xff] %v253
    // Predicated region
    $region34: #{mlp_pallas_forward.1} parent=1 // pred_check
      _
    $region35: #{mlp_pallas_forward.1} parent=1 // pred_check_branch
      %259 = sbr.rel (0) target = $region37
    $region36: #{mlp_pallas_forward.1} parent=1 // pred_region
      _
    $region37: #{mlp_pallas_forward.1} parent=1 // pred_fallthru
      _
    // Predicated region
    $region38: #{mlp_pallas_forward.1} parent=1 // pred_check
      _
    $region39: #{mlp_pallas_forward.1} parent=1 // pred_check_branch
      %261 = sbr.rel (0) target = $region41
    $region40: #{mlp_pallas_forward.1} parent=1 // pred_region
      _
    $region41: #{mlp_pallas_forward.1} parent=1 // pred_fallthru
      _
    %262 = vsyncpa [#allocation3], 1

</llo_original>
